<compile_context>
chip_gen: v6e
topology: v6e:2x2x1
jax: 0.10.0
libtpu: 0.0.40
codegen_flags: <defaults>
</compile_context>

<pallas_src>
import jax
import jax.numpy as jnp
import numpy as np
from jax import lax
from jax.experimental import pallas as pl
from jax.experimental.pallas import tpu as pltpu

# TODO(synk): CLIP ViT-B/32 encode_image / encode_text (pretrained weights,
# image file I/O, BPE tokenization) have no clean Pallas equivalent; the
# kernel consumes the encoder output feature tensors directly.

_EPS = 1e-12
_LANE = 128
_VMEM_LIMIT = 32 * 1024 * 1024   # fits scoped VMEM budgets on v5e/v6e/v7x
_ROW_TILE_CAP = 512              # query-row tile cap
_COL_TILE_CAP = 2048             # resident-target cap (score-tile columns)


def _round_up(x, m):
    return ((x + m - 1) // m) * m


# ----------------------------------------------------------------------------
# Fused kernel.
#   j == 0 : combiner split-matmul + L2 normalize + exp(temperature) scaling
#            of the query row tile into a VMEM scratch accumulator.
#   every j: normalize the target tile and emit the (i, j) score block
#            out = fused_n(i) @ tgt_n(j).T   (contract last dims, f32 acc).
# ----------------------------------------------------------------------------
def _cir_fused_kernel(scale_ref, ref_ref, txt_ref, tgt_ref, wv_ref, wt_ref,
                      b_ref, out_ref, fused_sc):
    eps2 = jnp.float32(_EPS * _EPS)
    mxu_dtype = tgt_ref.dtype

    @pl.when(pl.program_id(1) == 0)
    def _():
        # concat([ref, txt]) @ W.T + b  ==  ref @ Wv + txt @ Wt + b
        fused = (
            jnp.dot(ref_ref[...], wv_ref[...], preferred_element_type=jnp.float32)
            + jnp.dot(txt_ref[...], wt_ref[...], preferred_element_type=jnp.float32)
            + b_ref[...]
        )
        # F.normalize: x / max(||x||, eps) == x * rsqrt(max(sum(x^2), eps^2));
        # exp(temperature) folded in here (B*E elements, not B*B).
        inv_f = lax.rsqrt(
            jnp.maximum(jnp.sum(fused * fused, axis=-1, keepdims=True), eps2))
        fused_sc[...] = (scale_ref[0, 0] * inv_f) * fused

    tgt = tgt_ref[...].astype(jnp.float32)
    inv_t = lax.rsqrt(
        jnp.maximum(jnp.sum(tgt * tgt, axis=-1, keepdims=True), eps2))
    tgt_n = (tgt * inv_t).astype(mxu_dtype)

    # Contract the last dims of both operands (A @ B.T): no in-kernel
    # transpose; f32 accumulation regardless of operand dtype.
    out_ref[...] = lax.dot_general(
        fused_sc[...].astype(mxu_dtype), tgt_n,
        dimension_numbers=(((1,), (1,)), ((), ())),
        preferred_element_type=jnp.float32,
    )


# ----------------------------------------------------------------------------
# Parameter prep (once per model, outside the per-call hot path).
# ----------------------------------------------------------------------------
def prepare_combiner_params(w, b, vision_feature_dim, mxu_dtype=jnp.float32):
    """Split / transpose / pad Combiner.fc parameters.

    w: [E, Dv+Dt] (PyTorch Linear weight), b: [E].
    Returns Wv [Dv_pad, E_pad], Wt [Dt_pad, E_pad] in `mxu_dtype` (use
    jnp.bfloat16 for v5e/v6e MXU throughput, jnp.float32 for exactness) and
    bias [1, E_pad] kept in f32.
    """
    w = jnp.asarray(w, jnp.float32)
    b = jnp.asarray(b, jnp.float32)
    E, tot = w.shape
    Dv = vision_feature_dim
    Dt = tot - Dv
    # scores = fused @ tgt.T requires embed_dim == vision_feature_dim.
    assert E == Dv, "embed_dim must equal vision_feature_dim"
    Dv_pad, Dt_pad, E_pad = (_round_up(d, _LANE) for d in (Dv, Dt, E))
    wv = jnp.pad(w[:, :Dv].T, ((0, Dv_pad - Dv), (0, E_pad - E))).astype(mxu_dtype)
    wt = jnp.pad(w[:, Dv:].T, ((0, Dt_pad - Dt), (0, E_pad - E))).astype(mxu_dtype)
    bias = jnp.pad(b.reshape(1, E), ((0, 0), (0, E_pad - E)))
    return wv, wt, bias


# ----------------------------------------------------------------------------
# Forward wrapper.
# ----------------------------------------------------------------------------
@jax.jit
def cir_forward(temperature, ref_feats, text_feats, tgt_feats, wv_p, wt_p, bias_p):
    """temperature: scalar; ref/tgt: [B, Dv]; text: [B, Dt];
    wv_p/wt_p/bias_p from prepare_combiner_params (pre-split, pre-padded)."""
    B, Dv = ref_feats.shape
    Dt = text_feats.shape[1]
    Dv_pad, E_pad = wv_p.shape
    Dt_pad = wt_p.shape[0]
    assert tgt_feats.shape == (B, Dv)
    assert Dv_pad >= Dv and Dt_pad >= Dt
    assert E_pad == Dv_pad, "scores matmul requires embed_dim == vision_feature_dim"
    mxu_dtype = wv_p.dtype

    b_tile = min(_ROW_TILE_CAP, _round_up(B, _LANE))
    B_pad = _round_up(B, b_tile)
    nb_i = B_pad // b_tile
    # Target-column tile: fully resident when it fits; otherwise stream tiles.
    tj_tile = B_pad if B_pad <= _COL_TILE_CAP else b_tile
    nb_j = B_pad // tj_tile

    def pad2(x, rows, cols):
        return jnp.pad(x.astype(mxu_dtype),
                       ((0, rows - x.shape[0]), (0, cols - x.shape[1])))

    ref_p = pad2(ref_feats, B_pad, Dv_pad)
    txt_p = pad2(text_feats, B_pad, Dt_pad)
    tgt_p = pad2(tgt_feats, B_pad, Dv_pad)
    scale = jnp.exp(jnp.asarray(temperature, jnp.float32)).reshape(1, 1)

    resident = pl.Buffered(1)   # constant blocks: no double-buffering
    if nb_j == 1:
        tgt_spec = pl.BlockSpec((tj_tile, Dv_pad), lambda i, j: (j, 0),
                                pipeline_mode=resident)
    else:
        tgt_spec = pl.BlockSpec((tj_tile, Dv_pad), lambda i, j: (j, 0))

    scores_p = pl.pallas_call(
        _cir_fused_kernel,
        out_shape=jax.ShapeDtypeStruct((B_pad, B_pad), jnp.float32),
        grid=(nb_i, nb_j),
        in_specs=[
            pl.BlockSpec(memory_space=pltpu.MemorySpace.SMEM),      # exp(temp)
            pl.BlockSpec((b_tile, Dv_pad), lambda i, j: (i, 0)),    # ref feats
            pl.BlockSpec((b_tile, Dt_pad), lambda i, j: (i, 0)),    # text feats
            tgt_spec,                                               # tgt feats
            pl.BlockSpec((Dv_pad, E_pad), lambda i, j: (0, 0),
                         pipeline_mode=resident),                   # Wv
            pl.BlockSpec((Dt_pad, E_pad), lambda i, j: (0, 0),
                         pipeline_mode=resident),                   # Wt
            pl.BlockSpec((1, E_pad), lambda i, j: (0, 0),
                         pipeline_mode=resident),                   # bias
        ],
        out_specs=pl.BlockSpec((b_tile, tj_tile), lambda i, j: (i, j)),
        scratch_shapes=[pltpu.VMEM((b_tile, E_pad), jnp.float32)],
        compiler_params=pltpu.CompilerParams(
            dimension_semantics=("parallel", "arbitrary"),
            vmem_limit_bytes=_VMEM_LIMIT,
        ),
    )(scale, ref_p, txt_p, tgt_p, wv_p, wt_p, bias_p)

    return scores_p[:B, :B]


# ----------------------------------------------------------------------------
# Pure-JAX reference (mirrors the PyTorch forward from the feature stage on).
# ----------------------------------------------------------------------------
def cir_reference(temperature, ref_feats, text_feats, tgt_feats, w, b):
    combined = jnp.concatenate([ref_feats, text_feats], axis=1)
    fused = combined @ w.T + b
    fused = fused / jnp.maximum(
        jnp.linalg.norm(fused, axis=1, keepdims=True), _EPS)
    tgt = tgt_feats / jnp.maximum(
        jnp.linalg.norm(tgt_feats, axis=1, keepdims=True), _EPS)
    return jnp.exp(temperature) * fused @ tgt.T


if __name__ == "__main__":
    # Small shapes consistent with the forward pass (stand-ins for CLIP dims).
    B, Dv, Dt, E = 8, 32, 32, 32

    key = jax.random.PRNGKey(0)
    k1, k2, k3, k4, k5 = jax.random.split(key, 5)

    # "Encoder outputs" (stand-ins for CLIP features).
    ref_feats = jax.random.normal(k1, (B, Dv), jnp.float32)
    text_feats = jax.random.normal(k2, (B, Dt), jnp.float32)
    tgt_feats = jax.random.normal(k3, (B, Dv), jnp.float32)

    # Combiner.fc parameters (deterministic, PyTorch-style uniform init).
    fan_in = Dv + Dt
    bound = 1.0 / np.sqrt(fan_in)
    w = jax.random.uniform(k4, (E, Dv + Dt), jnp.float32, -bound, bound)
    b = jax.random.uniform(k5, (E,), jnp.float32, -bound, bound)

    # temperature = log(1 / 0.07)
    temperature = jnp.float32(np.log(1.0 / 0.07))

    expected = cir_reference(temperature, ref_feats, text_feats, tgt_feats, w, b)

    # f32 MXU path (matches the PyTorch numerics closely).
    wv_p, wt_p, bias_p = prepare_combiner_params(w, b, Dv)
    scores = cir_forward(temperature, ref_feats, text_feats, tgt_feats,
                         wv_p, wt_p, bias_p)
    scores = jax.block_until_ready(scores)
    assert scores.shape == (B, B)
    np.testing.assert_allclose(np.asarray(scores), np.asarray(expected),
                               rtol=1e-5, atol=1e-4)

    # bf16 MXU operand path (v5e/v6e throughput; f32 accumulation kept).
    wv_b, wt_b, bias_b = prepare_combiner_params(w, b, Dv,
                                                 mxu_dtype=jnp.bfloat16)
    scores_bf16 = cir_forward(temperature, ref_feats, text_feats, tgt_feats,
                              wv_b, wt_b, bias_b)
    scores_bf16 = jax.block_until_ready(scores_bf16)
    np.testing.assert_allclose(np.asarray(scores_bf16), np.asarray(expected),
                               rtol=5e-2, atol=5e-1)

    print("KERNEL_OK")
</pallas_src>

<mosaic_0001>
module attributes {stable_mosaic.version = 11 : i64} {
  func.func @_cir_fused_kernel(%arg0: i32, %arg1: i32, %arg2: memref<1x1xf32, #tpu.memory_space<smem>>, %arg3: memref<128x128xf32, #tpu.memory_space<vmem>>, %arg4: memref<128x128xf32, #tpu.memory_space<vmem>>, %arg5: memref<128x128xf32, #tpu.memory_space<vmem>>, %arg6: memref<128x128xf32, #tpu.memory_space<vmem>>, %arg7: memref<128x128xf32, #tpu.memory_space<vmem>>, %arg8: memref<1x128xf32, #tpu.memory_space<vmem>>, %arg9: memref<128x128xf32, #tpu.memory_space<vmem>>, %arg10: memref<128x128xf32, #tpu.memory_space<vmem>>) attributes {dimension_semantics = [#tpu.dimension_semantics<parallel>, #tpu.dimension_semantics<arbitrary>], iteration_bounds = array<i64: 1, 1>, scalar_prefetch = 0 : i64, scratch_operands = 1 : i64, tpu.core_type = #tpu.core_type<tc>, window_params = [{transform_indices = @transform_0, window_bounds = array<i64: 1, 1>}, {transform_indices = @transform_1, window_bounds = array<i64: 128, 128>}, {transform_indices = @transform_2, window_bounds = array<i64: 128, 128>}, {pipeline_mode = #tpu.pipeline_mode<synchronous>, transform_indices = @transform_3, window_bounds = array<i64: 128, 128>}, {pipeline_mode = #tpu.pipeline_mode<synchronous>, transform_indices = @transform_4, window_bounds = array<i64: 128, 128>}, {pipeline_mode = #tpu.pipeline_mode<synchronous>, transform_indices = @transform_5, window_bounds = array<i64: 128, 128>}, {pipeline_mode = #tpu.pipeline_mode<synchronous>, transform_indices = @transform_6, window_bounds = array<i64: 1, 128>}, {transform_indices = @transform_7, window_bounds = array<i64: 128, 128>}]} {
    %c0_i32 = arith.constant 0 : i32
    %0 = arith.cmpi eq, %arg1, %c0_i32 : i32
    %1 = arith.extui %0 : i1 to i32
    %cst = arith.constant 1.000000e-24 : f32
    %c0_i32_0 = arith.constant 0 : i32
    %2 = arith.cmpi ne, %1, %c0_i32_0 : i32
    scf.if %2 {
      %c0_9 = arith.constant 0 : index
      %c0_10 = arith.constant 0 : index
      %15 = vector.load %arg3[%c0_9, %c0_10] : memref<128x128xf32, #tpu.memory_space<vmem>>, vector<128x128xf32>
      %c0_11 = arith.constant 0 : index
      %c0_12 = arith.constant 0 : index
      %16 = vector.load %arg6[%c0_11, %c0_12] : memref<128x128xf32, #tpu.memory_space<vmem>>, vector<128x128xf32>
      %cst_13 = arith.constant dense<0.000000e+00> : vector<128x128xf32>
      %17 = tpu.matmul %15, %16, %cst_13 {dimension_numbers = #tpu.dot_dimension_numbers<[1], [0], [0], [1], [0, 0, 1, 1], [], []>} : vector<128x128xf32>, vector<128x128xf32>, vector<128x128xf32> -> vector<128x128xf32>
      %c0_14 = arith.constant 0 : index
      %c0_15 = arith.constant 0 : index
      %18 = vector.load %arg4[%c0_14, %c0_15] : memref<128x128xf32, #tpu.memory_space<vmem>>, vector<128x128xf32>
      %c0_16 = arith.constant 0 : index
      %c0_17 = arith.constant 0 : index
      %19 = vector.load %arg7[%c0_16, %c0_17] : memref<128x128xf32, #tpu.memory_space<vmem>>, vector<128x128xf32>
      %cst_18 = arith.constant dense<0.000000e+00> : vector<128x128xf32>
      %20 = tpu.matmul %18, %19, %cst_18 {dimension_numbers = #tpu.dot_dimension_numbers<[1], [0], [0], [1], [0, 0, 1, 1], [], []>} : vector<128x128xf32>, vector<128x128xf32>, vector<128x128xf32> -> vector<128x128xf32>
      %21 = arith.addf %17, %20 : vector<128x128xf32>
      %c0_19 = arith.constant 0 : index
      %c0_20 = arith.constant 0 : index
      %22 = vector.load %arg8[%c0_19, %c0_20] : memref<1x128xf32, #tpu.memory_space<vmem>>, vector<1x128xf32>
      %23 = vector.broadcast %22 : vector<1x128xf32> to vector<128x128xf32>
      %24 = arith.addf %21, %23 : vector<128x128xf32>
      %25 = arith.mulf %24, %24 : vector<128x128xf32>
      %cst_21 = arith.constant dense<0.000000e+00> : vector<128xf32>
      %26 = vector.multi_reduction <add>, %25, %cst_21 [1] : vector<128x128xf32> to vector<128xf32>
      %27 = vector.shape_cast %26 : vector<128xf32> to vector<128x1xf32>
      %28 = vector.broadcast %cst : f32 to vector<128x1xf32>
      %29 = arith.maximumf %27, %28 : vector<128x1xf32>
      %30 = math.rsqrt %29 : vector<128x1xf32>
      %c0_22 = arith.constant 0 : index
      %c0_23 = arith.constant 0 : index
      %31 = memref.load %arg2[%c0_22, %c0_23] : memref<1x1xf32, #tpu.memory_space<smem>>
      %32 = vector.broadcast %31 : f32 to vector<128x1xf32>
      %33 = arith.mulf %32, %30 : vector<128x1xf32>
      %34 = vector.broadcast %33 : vector<128x1xf32> to vector<128x128xf32>
      %35 = arith.mulf %34, %24 : vector<128x128xf32>
      %c0_24 = arith.constant 0 : index
      %c0_25 = arith.constant 0 : index
      %36 = vector.load %arg10[%c0_24, %c0_25] : memref<128x128xf32, #tpu.memory_space<vmem>>, vector<128x128xf32>
      tpu.vector_store %arg10[%c0_24, %c0_25], %35 {strides = array<i32>} : memref<128x128xf32, #tpu.memory_space<vmem>>, vector<128x128xf32>,
    } else {
    }
    %c0 = arith.constant 0 : index
    %c0_1 = arith.constant 0 : index
    %3 = vector.load %arg5[%c0, %c0_1] : memref<128x128xf32, #tpu.memory_space<vmem>>, vector<128x128xf32>
    %4 = arith.mulf %3, %3 : vector<128x128xf32>
    %cst_2 = arith.constant dense<0.000000e+00> : vector<128xf32>
    %5 = vector.multi_reduction <add>, %4, %cst_2 [1] : vector<128x128xf32> to vector<128xf32>
    %6 = vector.shape_cast %5 : vector<128xf32> to vector<128x1xf32>
    %cst_3 = arith.constant 1.000000e-24 : f32
    %7 = vector.broadcast %cst_3 : f32 to vector<128x1xf32>
    %8 = arith.maximumf %6, %7 : vector<128x1xf32>
    %9 = math.rsqrt %8 : vector<128x1xf32>
    %10 = vector.broadcast %9 : vector<128x1xf32> to vector<128x128xf32>
    %11 = arith.mulf %3, %10 : vector<128x128xf32>
    %c0_4 = arith.constant 0 : index
    %c0_5 = arith.constant 0 : index
    %12 = vector.load %arg10[%c0_4, %c0_5] : memref<128x128xf32, #tpu.memory_space<vmem>>, vector<128x128xf32>
    %cst_6 = arith.constant dense<0.000000e+00> : vector<128x128xf32>
    %13 = tpu.matmul %12, %11, %cst_6 {dimension_numbers = #tpu.dot_dimension_numbers<[1], [1], [0], [0], [0, 0, 1, 0], [], []>} : vector<128x128xf32>, vector<128x128xf32>, vector<128x128xf32> -> vector<128x128xf32>
    %c0_7 = arith.constant 0 : index
    %c0_8 = arith.constant 0 : index
    %14 = vector.load %arg9[%c0_7, %c0_8] : memref<128x128xf32, #tpu.memory_space<vmem>>, vector<128x128xf32>
    tpu.vector_store %arg9[%c0_7, %c0_8], %13 {strides = array<i32>} : memref<128x128xf32, #tpu.memory_space<vmem>>, vector<128x128xf32>,
    return
  }
  func.func @transform_0(%arg0: i32, %arg1: i32) -> (i32, i32) {
    %c0_i32 = arith.constant 0 : i32
    %c0_i32_0 = arith.constant 0 : i32
    %c0_i32_1 = arith.constant 0 : i32
    return %c0_i32, %c0_i32_0 : i32, i32
  }
  func.func @transform_1(%arg0: i32, %arg1: i32) -> (i32, i32) {
    %c0_i32 = arith.constant 0 : i32
    %c0_i32_0 = arith.constant 0 : i32
    return %arg0, %c0_i32 : i32, i32
  }
  func.func @transform_2(%arg0: i32, %arg1: i32) -> (i32, i32) {
    %c0_i32 = arith.constant 0 : i32
    %c0_i32_0 = arith.constant 0 : i32
    return %arg0, %c0_i32 : i32, i32
  }
  func.func @transform_3(%arg0: i32, %arg1: i32) -> (i32, i32) {
    %c0_i32 = arith.constant 0 : i32
    %c0_i32_0 = arith.constant 0 : i32
    return %arg1, %c0_i32 : i32, i32
  }
  func.func @transform_4(%arg0: i32, %arg1: i32) -> (i32, i32) {
    %c0_i32 = arith.constant 0 : i32
    %c0_i32_0 = arith.constant 0 : i32
    %c0_i32_1 = arith.constant 0 : i32
    return %c0_i32, %c0_i32_0 : i32, i32
  }
  func.func @transform_5(%arg0: i32, %arg1: i32) -> (i32, i32) {
    %c0_i32 = arith.constant 0 : i32
    %c0_i32_0 = arith.constant 0 : i32
    %c0_i32_1 = arith.constant 0 : i32
    return %c0_i32, %c0_i32_0 : i32, i32
  }
  func.func @transform_6(%arg0: i32, %arg1: i32) -> (i32, i32) {
    %c0_i32 = arith.constant 0 : i32
    %c0_i32_0 = arith.constant 0 : i32
    %c0_i32_1 = arith.constant 0 : i32
    return %c0_i32, %c0_i32_0 : i32, i32
  }
  func.func @transform_7(%arg0: i32, %arg1: i32) -> (i32, i32) {
    %c0_i32 = arith.constant 0 : i32
    return %arg0, %arg1 : i32, i32
  }
}

</mosaic_0001>

<llo_original>
// kernel: cir_forward.1
$region0: #{cir_forward.1}
  #allocation0 [shape = 'u32[]', space=smem, size = 0x4, offset = 0x4, fixed_abs, tag = 'smem constant byte address 0x4 - core index']
  #allocation1 [shape = 'u32[144,128]{1,0:T(1,128)}', space=vmem, size = 0x12000, scoped, tag = 'internal scratch']
  #allocation2 [shape = 'f32[128,128]{1,0:T(8,128)}', space=vmem, size = 0x10000, scoped, tag = 'scratch operand']
  #allocation3 [shape = 'f32[1,1]{1,0:T(1,128)S(6)}', space=smem, size = 0x200, scoped, tag = 'scoped memory for cir_forward.1']
  %s0 = inlined_call_operand.<no memory space> [shape: f32[1,1], index: 0, kind: input, shape index: {}]
  %s1 = inlined_call_operand.vmem [shape: f32[128,128], index: 1, kind: input, shape index: {}]
  %s2 = inlined_call_operand.vmem [shape: f32[128,128], index: 2, kind: input, shape index: {}]
  %s3 = inlined_call_operand.vmem [shape: f32[128,128], index: 3, kind: input, shape index: {}]
  %s4 = inlined_call_operand.vmem [shape: f32[128,128], index: 4, kind: input, shape index: {}]
  %s5 = inlined_call_operand.vmem [shape: f32[128,128], index: 5, kind: input, shape index: {}]
  %s6 = inlined_call_operand.vmem [shape: f32[1,128], index: 6, kind: input, shape index: {}]
  %s7 = inlined_call_operand.vmem [shape: f32[128,128], index: 7, kind: output, shape index: {}]
  %s8 = sld [smem:[#allocation0]]
  $region42: #{cir_forward.1} parent=0
    _
  %s10 = ssub.s32 1, %s8
  %s11 = scalar_select 0, %s10, %s8
  %12 = sst [smem:[#allocation3]] %s0
  // Predicated region
  $region2: #{cir_forward.1} parent=0 // pred_check
    _
  $region3: #{cir_forward.1} parent=0 // pred_check_branch
    %14 = sbr.rel (0) target = $region5
  $region4: #{cir_forward.1} parent=0 // pred_region
    _
  $region5: #{cir_forward.1} parent=0 // pred_fallthru
    _
  // Predicated region
  $region6: #{cir_forward.1} parent=0 // pred_check
    _
  $region7: #{cir_forward.1} parent=0 // pred_check_branch
    %16 = sbr.rel (0) target = $region9
  $region8: #{cir_forward.1} parent=0 // pred_region
    _
  $region9: #{cir_forward.1} parent=0 // pred_fallthru
    _
  // Predicated region
  $region10: #{cir_forward.1} parent=0 // pred_check
    _
  $region11: #{cir_forward.1} parent=0 // pred_check_branch
    %18 = sbr.rel (0) target = $region13
  $region12: #{cir_forward.1} parent=0 // pred_region
    _
  $region13: #{cir_forward.1} parent=0 // pred_fallthru
    _
  // Predicated region
  $region14: #{cir_forward.1} parent=0 // pred_check
    _
  $region15: #{cir_forward.1} parent=0 // pred_check_branch
    %20 = sbr.rel (0) target = $region17
  $region16: #{cir_forward.1} parent=0 // pred_region
    _
  $region17: #{cir_forward.1} parent=0 // pred_fallthru
    _
  // Predicated region
  $region18: #{cir_forward.1} parent=0 // pred_check
    _
  $region19: #{cir_forward.1} parent=0 // pred_check_branch
    %22 = sbr.rel (0) target = $region21
  $region20: #{cir_forward.1} parent=0 // pred_region
    _
  $region21: #{cir_forward.1} parent=0 // pred_fallthru
    _
  // Predicated region
  $region22: #{cir_forward.1} parent=0 // pred_check
    _
  $region23: #{cir_forward.1} parent=0 // pred_check_branch
    %24 = sbr.rel (0) target = $region25
  $region24: #{cir_forward.1} parent=0 // pred_region
    _
  $region25: #{cir_forward.1} parent=0 // pred_fallthru
    _
  // Predicated region
  $region26: #{cir_forward.1} parent=0 // pred_check
    _
  $region27: #{cir_forward.1} parent=0 // pred_check_branch
    %26 = sbr.rel (0) target = $region29
  $region28: #{cir_forward.1} parent=0 // pred_region
    _
  $region29: #{cir_forward.1} parent=0 // pred_fallthru
    _
  %p27 = scmp.eq.s32.totalorder 0, 0
  // Predicated region
  $region30: #{cir_forward.1} parent=0 // pred_check
    %p28 = pneg %p27
  $region31: #{cir_forward.1} parent=0 // pred_check_branch
    %30 = sbr.rel (%p28) target = $region33
  $region32: #{cir_forward.1} parent=0 // pred_region
    %v31 = vld [vmem:[%s1] sm:$0xff]
    %v32 = vld [vmem:[%s1 + $0x8] sm:$0xff]
    %v33 = vld [vmem:[%s1 + $0x10] sm:$0xff]
    %v34 = vld [vmem:[%s1 + $0x18] sm:$0xff]
    %v35 = vld [vmem:[%s1 + $0x20] sm:$0xff]
    %v36 = vld [vmem:[%s1 + $0x28] sm:$0xff]
    %v37 = vld [vmem:[%s1 + $0x30] sm:$0xff]
    %v38 = vld [vmem:[%s1 + $0x38] sm:$0xff]
    %v39 = vld [vmem:[%s1 + $0x40] sm:$0xff]
    %v40 = vld [vmem:[%s1 + $0x48] sm:$0xff]
    %v41 = vld [vmem:[%s1 + $0x50] sm:$0xff]
    %v42 = vld [vmem:[%s1 + $0x58] sm:$0xff]
    %v43 = vld [vmem:[%s1 + $0x60] sm:$0xff]
    %v44 = vld [vmem:[%s1 + $0x68] sm:$0xff]
    %v45 = vld [vmem:[%s1 + $0x70] sm:$0xff]
    %v46 = vld [vmem:[%s1 + $0x78] sm:$0xff]
    %v47 = vld [vmem:[%s4] sm:$0xff]
    %v48 = vld [vmem:[%s4 + $0x8] sm:$0xff]
    %v49 = vld [vmem:[%s4 + $0x10] sm:$0xff]
    %v50 = vld [vmem:[%s4 + $0x18] sm:$0xff]
    %v51 = vld [vmem:[%s4 + $0x20] sm:$0xff]
    %v52 = vld [vmem:[%s4 + $0x28] sm:$0xff]
    %v53 = vld [vmem:[%s4 + $0x30] sm:$0xff]
    %v54 = vld [vmem:[%s4 + $0x38] sm:$0xff]
    %v55 = vld [vmem:[%s4 + $0x40] sm:$0xff]
    %v56 = vld [vmem:[%s4 + $0x48] sm:$0xff]
    %v57 = vld [vmem:[%s4 + $0x50] sm:$0xff]
    %v58 = vld [vmem:[%s4 + $0x58] sm:$0xff]
    %v59 = vld [vmem:[%s4 + $0x60] sm:$0xff]
    %v60 = vld [vmem:[%s4 + $0x68] sm:$0xff]
    %v61 = vld [vmem:[%s4 + $0x70] sm:$0xff]
    %v62 = vld [vmem:[%s4 + $0x78] sm:$0xff]
    %v63 = vld [vmem:[%s2] sm:$0xff]
    %v64 = vld [vmem:[%s2 + $0x8] sm:$0xff]
    %v65 = vld [vmem:[%s2 + $0x10] sm:$0xff]
    %v66 = vld [vmem:[%s2 + $0x18] sm:$0xff]
    %v67 = vld [vmem:[%s2 + $0x20] sm:$0xff]
    %v68 = vld [vmem:[%s2 + $0x28] sm:$0xff]
    %v69 = vld [vmem:[%s2 + $0x30] sm:$0xff]
    %v70 = vld [vmem:[%s2 + $0x38] sm:$0xff]
    %v71 = vld [vmem:[%s2 + $0x40] sm:$0xff]
    %v72 = vld [vmem:[%s2 + $0x48] sm:$0xff]
    %v73 = vld [vmem:[%s2 + $0x50] sm:$0xff]
    %v74 = vld [vmem:[%s2 + $0x58] sm:$0xff]
    %v75 = vld [vmem:[%s2 + $0x60] sm:$0xff]
    %v76 = vld [vmem:[%s2 + $0x68] sm:$0xff]
    %v77 = vld [vmem:[%s2 + $0x70] sm:$0xff]
    %v78 = vld [vmem:[%s2 + $0x78] sm:$0xff]
    %v79 = vld [vmem:[%s5] sm:$0xff]
    %v80 = vld [vmem:[%s5 + $0x8] sm:$0xff]
    %v81 = vld [vmem:[%s5 + $0x10] sm:$0xff]
    %v82 = vld [vmem:[%s5 + $0x18] sm:$0xff]
    %v83 = vld [vmem:[%s5 + $0x20] sm:$0xff]
    %v84 = vld [vmem:[%s5 + $0x28] sm:$0xff]
    %v85 = vld [vmem:[%s5 + $0x30] sm:$0xff]
    %v86 = vld [vmem:[%s5 + $0x38] sm:$0xff]
    %v87 = vld [vmem:[%s5 + $0x40] sm:$0xff]
    %v88 = vld [vmem:[%s5 + $0x48] sm:$0xff]
    %v89 = vld [vmem:[%s5 + $0x50] sm:$0xff]
    %v90 = vld [vmem:[%s5 + $0x58] sm:$0xff]
    %v91 = vld [vmem:[%s5 + $0x60] sm:$0xff]
    %v92 = vld [vmem:[%s5 + $0x68] sm:$0xff]
    %v93 = vld [vmem:[%s5 + $0x70] sm:$0xff]
    %v94 = vld [vmem:[%s5 + $0x78] sm:$0xff]
    %95 = vmatprep.subr.mxu0 0.0
    %96 = vmatpush1.msra.mxu0 %v94
    %97 = vmatprep.subr.mxu0 0.0
    %98 = vmatpush1.msra.mxu0 %v93
    %99 = vmatprep.subr.mxu0 0.0
    %100 = vmatpush1.msra.mxu0 %v92
    %101 = vmatprep.subr.mxu0 0.0
    %102 = vmatpush1.msra.mxu0 %v91
    %103 = vmatprep.subr.mxu0 0.0
    %104 = vmatpush1.msra.mxu0 %v90
    %105 = vmatprep.subr.mxu0 0.0
    %106 = vmatpush1.msra.mxu0 %v89
    %107 = vmatprep.subr.mxu0 0.0
    %108 = vmatpush1.msra.mxu0 %v88
    %109 = vmatprep.subr.mxu0 0.0
    %110 = vmatpush1.msra.mxu0 %v87
    %111 = vmatprep.subr.mxu0 0.0
    %112 = vmatpush1.msra.mxu0 %v86
    %113 = vmatprep.subr.mxu0 0.0
    %114 = vmatpush1.msra.mxu0 %v85
    %115 = vmatprep.subr.mxu0 0.0
    %116 = vmatpush1.msra.mxu0 %v84
    %117 = vmatprep.subr.mxu0 0.0
    %118 = vmatpush1.msra.mxu0 %v83
    %119 = vmatprep.subr.mxu0 0.0
    %120 = vmatpush1.msra.mxu0 %v82
    %121 = vmatprep.subr.mxu0 0.0
    %122 = vmatpush1.msra.mxu0 %v81
    %123 = vmatprep.subr.mxu0 0.0
    %124 = vmatpush1.msra.mxu0 %v80
    %125 = vmatprep.subr.mxu0 0.0
    %126 = vmatpush1.msra.mxu0 %v79
    %127 = vmatprep.subr.mxu0 0.0
    %128 = vmatpush2.msra.mxu0 0.0
    %129 = vmatprep.subr.mxu0 0.0
    %130 = vmatpush2.msra.mxu0 0.0
    %131 = vmatprep.subr.mxu0 0.0
    %132 = vmatpush2.msra.mxu0 0.0
    %133 = vmatprep.subr.mxu0 0.0
    %134 = vmatpush2.msra.mxu0 0.0
    %135 = vmatprep.subr.mxu0 0.0
    %136 = vmatpush2.msra.mxu0 0.0
    %137 = vmatprep.subr.mxu0 0.0
    %138 = vmatpush2.msra.mxu0 0.0
    %139 = vmatprep.subr.mxu0 0.0
    %140 = vmatpush2.msra.mxu0 0.0
    %141 = vmatprep.subr.mxu0 0.0
    %142 = vmatpush2.msra.mxu0 0.0
    %143 = vmatprep.subr.mxu0 0.0
    %144 = vmatpush2.msra.mxu0 0.0
    %145 = vmatprep.subr.mxu0 0.0
    %146 = vmatpush2.msra.mxu0 0.0
    %147 = vmatprep.subr.mxu0 0.0
    %148 = vmatpush2.msra.mxu0 0.0
    %149 = vmatprep.subr.mxu0 0.0
    %150 = vmatpush2.msra.mxu0 0.0
    %151 = vmatprep.subr.mxu0 0.0
    %152 = vmatpush2.msra.mxu0 0.0
    %153 = vmatprep.subr.mxu0 0.0
    %154 = vmatpush2.msra.mxu0 0.0
    %155 = vmatprep.subr.mxu0 0.0
    %156 = vmatpush2.msra.mxu0 0.0
    %157 = vmatprep.subr.mxu0 0.0
    %158 = vmatpush2.msra.mxu0 0.0
    %159 = vmatprep.mubr.f32.mxu0 0.0
    %160 = vmatmul.mubr.f32.gmra.mxu0 %v63
    %v161 = vpop.f32.mrf.mxu0
    %v162 = vadd.f32 0.0, %v161
    %v163 = vpop.f32.mrf.mxu0
    %164 = vmatprep.mubr.f32.mxu0 0.0
    %165 = vmatmul.mubr.f32.gmra.mxu0 %v64
    %v166 = vpop.f32.mrf.mxu0
    %v167 = vadd.f32 0.0, %v166
    %v168 = vpop.f32.mrf.mxu0
    %169 = vmatprep.mubr.f32.mxu0 0.0
    %170 = vmatmul.mubr.f32.gmra.mxu0 %v65
    %v171 = vpop.f32.mrf.mxu0
    %v172 = vadd.f32 0.0, %v171
    %v173 = vpop.f32.mrf.mxu0
    %174 = vmatprep.mubr.f32.mxu0 0.0
    %175 = vmatmul.mubr.f32.gmra.mxu0 %v66
    %v176 = vpop.f32.mrf.mxu0
    %v177 = vadd.f32 0.0, %v176
    %v178 = vpop.f32.mrf.mxu0
    %179 = vmatprep.mubr.f32.mxu0 0.0
    %180 = vmatmul.mubr.f32.gmra.mxu0 %v67
    %v181 = vpop.f32.mrf.mxu0
    %v182 = vadd.f32 0.0, %v181
    %v183 = vpop.f32.mrf.mxu0
    %184 = vmatprep.mubr.f32.mxu0 0.0
    %185 = vmatmul.mubr.f32.gmra.mxu0 %v68
    %v186 = vpop.f32.mrf.mxu0
    %v187 = vadd.f32 0.0, %v186
    %v188 = vpop.f32.mrf.mxu0
    %189 = vmatprep.mubr.f32.mxu0 0.0
    %190 = vmatmul.mubr.f32.gmra.mxu0 %v69
    %v191 = vpop.f32.mrf.mxu0
    %v192 = vadd.f32 0.0, %v191
    %v193 = vpop.f32.mrf.mxu0
    %194 = vmatprep.mubr.f32.mxu0 0.0
    %195 = vmatmul.mubr.f32.gmra.mxu0 %v70
    %v196 = vpop.f32.mrf.mxu0
    %v197 = vadd.f32 0.0, %v196
    %v198 = vpop.f32.mrf.mxu0
    %199 = vmatprep.mubr.f32.mxu0 0.0
    %200 = vmatmul.mubr.f32.gmra.mxu0 %v71
    %v201 = vpop.f32.mrf.mxu0
    %v202 = vadd.f32 0.0, %v201
    %v203 = vpop.f32.mrf.mxu0
    %204 = vmatprep.mubr.f32.mxu0 0.0
    %205 = vmatmul.mubr.f32.gmra.mxu0 %v72
    %v206 = vpop.f32.mrf.mxu0
    %v207 = vadd.f32 0.0, %v206
    %v208 = vpop.f32.mrf.mxu0
    %209 = vmatprep.mubr.f32.mxu0 0.0
    %210 = vmatmul.mubr.f32.gmra.mxu0 %v73
    %v211 = vpop.f32.mrf.mxu0
    %v212 = vadd.f32 0.0, %v211
    %v213 = vpop.f32.mrf.mxu0
    %214 = vmatprep.mubr.f32.mxu0 0.0
    %215 = vmatmul.mubr.f32.gmra.mxu0 %v74
    %v216 = vpop.f32.mrf.mxu0
    %v217 = vadd.f32 0.0, %v216
    %v218 = vpop.f32.mrf.mxu0
    %219 = vmatprep.mubr.f32.mxu0 0.0
    %220 = vmatmul.mubr.f32.gmra.mxu0 %v75
    %v221 = vpop.f32.mrf.mxu0
    %v222 = vadd.f32 0.0, %v221
    %v223 = vpop.f32.mrf.mxu0
    %224 = vmatprep.mubr.f32.mxu0 0.0
    %225 = vmatmul.mubr.f32.gmra.mxu0 %v76
    %v226 = vpop.f32.mrf.mxu0
    %v227 = vadd.f32 0.0, %v226
    %v228 = vpop.f32.mrf.mxu0
    %229 = vmatprep.mubr.f32.mxu0 0.0
    %230 = vmatmul.mubr.f32.gmra.mxu0 %v77
    %v231 = vpop.f32.mrf.mxu0
    %v232 = vadd.f32 0.0, %v231
    %v233 = vpop.f32.mrf.mxu0
    %234 = vmatprep.mubr.f32.mxu0 0.0
    %235 = vmatmul.mubr.f32.gmra.mxu0 %v78
    %v236 = vpop.f32.mrf.mxu0
    %v237 = vadd.f32 0.0, %v236
    %v238 = vpop.f32.mrf.mxu0
    %239 = vdwg.mxu0
    %240 = vmatprep.subr.mxu0 0.0
    %241 = vmatpush1.msra.mxu0 %v62
    %242 = vmatprep.subr.mxu0 0.0
    %243 = vmatpush1.msra.mxu0 %v61
    %244 = vmatprep.subr.mxu0 0.0
    %245 = vmatpush1.msra.mxu0 %v60
    %246 = vmatprep.subr.mxu0 0.0
    %247 = vmatpush1.msra.mxu0 %v59
    %248 = vmatprep.subr.mxu0 0.0
    %249 = vmatpush1.msra.mxu0 %v58
    %250 = vmatprep.subr.mxu0 0.0
    %251 = vmatpush1.msra.mxu0 %v57
    %252 = vmatprep.subr.mxu0 0.0
    %253 = vmatpush1.msra.mxu0 %v56
    %254 = vmatprep.subr.mxu0 0.0
    %255 = vmatpush1.msra.mxu0 %v55
    %256 = vmatprep.subr.mxu0 0.0
    %257 = vmatpush1.msra.mxu0 %v54
    %258 = vmatprep.subr.mxu0 0.0
    %259 = vmatpush1.msra.mxu0 %v53
    %260 = vmatprep.subr.mxu0 0.0
    %261 = vmatpush1.msra.mxu0 %v52
    %262 = vmatprep.subr.mxu0 0.0
    %263 = vmatpush1.msra.mxu0 %v51
    %264 = vmatprep.subr.mxu0 0.0
    %265 = vmatpush1.msra.mxu0 %v50
    %266 = vmatprep.subr.mxu0 0.0
    %267 = vmatpush1.msra.mxu0 %v49
    %268 = vmatprep.subr.mxu0 0.0
    %269 = vmatpush1.msra.mxu0 %v48
    %270 = vmatprep.subr.mxu0 0.0
    %271 = vmatpush1.msra.mxu0 %v47
    %272 = vmatprep.subr.mxu0 0.0
    %273 = vmatpush2.msra.mxu0 0.0
    %274 = vmatprep.subr.mxu0 0.0
    %275 = vmatpush2.msra.mxu0 0.0
    %276 = vmatprep.subr.mxu0 0.0
    %277 = vmatpush2.msra.mxu0 0.0
    %278 = vmatprep.subr.mxu0 0.0
    %279 = vmatpush2.msra.mxu0 0.0
    %280 = vmatprep.subr.mxu0 0.0
    %281 = vmatpush2.msra.mxu0 0.0
    %282 = vmatprep.subr.mxu0 0.0
    %283 = vmatpush2.msra.mxu0 0.0
    %284 = vmatprep.subr.mxu0 0.0
    %285 = vmatpush2.msra.mxu0 0.0
    %286 = vmatprep.subr.mxu0 0.0
    %287 = vmatpush2.msra.mxu0 0.0
    %288 = vmatprep.subr.mxu0 0.0
    %289 = vmatpush2.msra.mxu0 0.0
    %290 = vmatprep.subr.mxu0 0.0
    %291 = vmatpush2.msra.mxu0 0.0
    %292 = vmatprep.subr.mxu0 0.0
    %293 = vmatpush2.msra.mxu0 0.0
    %294 = vmatprep.subr.mxu0 0.0
    %295 = vmatpush2.msra.mxu0 0.0
    %296 = vmatprep.subr.mxu0 0.0
    %297 = vmatpush2.msra.mxu0 0.0
    %298 = vmatprep.subr.mxu0 0.0
    %299 = vmatpush2.msra.mxu0 0.0
    %300 = vmatprep.subr.mxu0 0.0
    %301 = vmatpush2.msra.mxu0 0.0
    %302 = vmatprep.subr.mxu0 0.0
    %303 = vmatpush2.msra.mxu0 0.0
    %304 = vmatprep.mubr.f32.mxu0 0.0
    %305 = vmatmul.mubr.f32.gmra.mxu0 %v31
    %v306 = vpop.f32.mrf.mxu0
    %v307 = vadd.f32 %v162, %v306
    %v308 = vpop.f32.mrf.mxu0
    %309 = vmatprep.mubr.f32.mxu0 0.0
    %310 = vmatmul.mubr.f32.gmra.mxu0 %v32
    %v311 = vpop.f32.mrf.mxu0
    %v312 = vadd.f32 %v167, %v311
    %v313 = vpop.f32.mrf.mxu0
    %314 = vmatprep.mubr.f32.mxu0 0.0
    %315 = vmatmul.mubr.f32.gmra.mxu0 %v33
    %v316 = vpop.f32.mrf.mxu0
    %v317 = vadd.f32 %v172, %v316
    %v318 = vpop.f32.mrf.mxu0
    %319 = vmatprep.mubr.f32.mxu0 0.0
    %320 = vmatmul.mubr.f32.gmra.mxu0 %v34
    %v321 = vpop.f32.mrf.mxu0
    %v322 = vadd.f32 %v177, %v321
    %v323 = vpop.f32.mrf.mxu0
    %324 = vmatprep.mubr.f32.mxu0 0.0
    %325 = vmatmul.mubr.f32.gmra.mxu0 %v35
    %v326 = vpop.f32.mrf.mxu0
    %v327 = vadd.f32 %v182, %v326
    %v328 = vpop.f32.mrf.mxu0
    %329 = vmatprep.mubr.f32.mxu0 0.0
    %330 = vmatmul.mubr.f32.gmra.mxu0 %v36
    %v331 = vpop.f32.mrf.mxu0
    %v332 = vadd.f32 %v187, %v331
    %v333 = vpop.f32.mrf.mxu0
    %334 = vmatprep.mubr.f32.mxu0 0.0
    %335 = vmatmul.mubr.f32.gmra.mxu0 %v37
    %v336 = vpop.f32.mrf.mxu0
    %v337 = vadd.f32 %v192, %v336
    %v338 = vpop.f32.mrf.mxu0
    %339 = vmatprep.mubr.f32.mxu0 0.0
    %340 = vmatmul.mubr.f32.gmra.mxu0 %v38
    %v341 = vpop.f32.mrf.mxu0
    %v342 = vadd.f32 %v197, %v341
    %v343 = vpop.f32.mrf.mxu0
    %344 = vmatprep.mubr.f32.mxu0 0.0
    %345 = vmatmul.mubr.f32.gmra.mxu0 %v39
    %v346 = vpop.f32.mrf.mxu0
    %v347 = vadd.f32 %v202, %v346
    %v348 = vpop.f32.mrf.mxu0
    %349 = vmatprep.mubr.f32.mxu0 0.0
    %350 = vmatmul.mubr.f32.gmra.mxu0 %v40
    %v351 = vpop.f32.mrf.mxu0
    %v352 = vadd.f32 %v207, %v351
    %v353 = vpop.f32.mrf.mxu0
    %354 = vmatprep.mubr.f32.mxu0 0.0
    %355 = vmatmul.mubr.f32.gmra.mxu0 %v41
    %v356 = vpop.f32.mrf.mxu0
    %v357 = vadd.f32 %v212, %v356
    %v358 = vpop.f32.mrf.mxu0
    %359 = vmatprep.mubr.f32.mxu0 0.0
    %360 = vmatmul.mubr.f32.gmra.mxu0 %v42
    %v361 = vpop.f32.mrf.mxu0
    %v362 = vadd.f32 %v217, %v361
    %v363 = vpop.f32.mrf.mxu0
    %364 = vmatprep.mubr.f32.mxu0 0.0
    %365 = vmatmul.mubr.f32.gmra.mxu0 %v43
    %v366 = vpop.f32.mrf.mxu0
    %v367 = vadd.f32 %v222, %v366
    %v368 = vpop.f32.mrf.mxu0
    %369 = vmatprep.mubr.f32.mxu0 0.0
    %370 = vmatmul.mubr.f32.gmra.mxu0 %v44
    %v371 = vpop.f32.mrf.mxu0
    %v372 = vadd.f32 %v227, %v371
    %v373 = vpop.f32.mrf.mxu0
    %374 = vmatprep.mubr.f32.mxu0 0.0
    %375 = vmatmul.mubr.f32.gmra.mxu0 %v45
    %v376 = vpop.f32.mrf.mxu0
    %v377 = vadd.f32 %v232, %v376
    %v378 = vpop.f32.mrf.mxu0
    %379 = vmatprep.mubr.f32.mxu0 0.0
    %380 = vmatmul.mubr.f32.gmra.mxu0 %v46
    %v381 = vpop.f32.mrf.mxu0
    %v382 = vadd.f32 %v237, %v381
    %v383 = vpop.f32.mrf.mxu0
    %384 = vdwg.mxu0
    %v385 = vld [vmem:[%s6] sm:$0x1]
    %v387 = vlaneseq
    %v388 = vshrl.u32 %v387, 7
    %v389 = vsub.s32 0, %v388
    %v390 = vrot.slane %v385, %v389
    %v392 = vadd.f32 %v307, %v390
    %v393 = vadd.f32 %v312, %v390
    %v394 = vadd.f32 %v317, %v390
    %v395 = vadd.f32 %v322, %v390
    %v396 = vadd.f32 %v327, %v390
    %v397 = vadd.f32 %v332, %v390
    %v398 = vadd.f32 %v337, %v390
    %v399 = vadd.f32 %v342, %v390
    %v400 = vadd.f32 %v347, %v390
    %v401 = vadd.f32 %v352, %v390
    %v402 = vadd.f32 %v357, %v390
    %v403 = vadd.f32 %v362, %v390
    %v404 = vadd.f32 %v367, %v390
    %v405 = vadd.f32 %v372, %v390
    %v406 = vadd.f32 %v377, %v390
    %v407 = vadd.f32 %v382, %v390
    %v408 = vmul.f32 %v392, %v392
    %v409 = vmul.f32 %v393, %v393
    %v410 = vmul.f32 %v394, %v394
    %v411 = vmul.f32 %v395, %v395
    %v412 = vmul.f32 %v396, %v396
    %v413 = vmul.f32 %v397, %v397
    %v414 = vmul.f32 %v398, %v398
    %v415 = vmul.f32 %v399, %v399
    %v416 = vmul.f32 %v400, %v400
    %v417 = vmul.f32 %v401, %v401
    %v418 = vmul.f32 %v402, %v402
    %v419 = vmul.f32 %v403, %v403
    %v420 = vmul.f32 %v404, %v404
    %v421 = vmul.f32 %v405, %v405
    %v422 = vmul.f32 %v406, %v406
    %v423 = vmul.f32 %v407, %v407
    %424 = vadd.xlane.f32.xlu0 %v408
    %v425 = vpop.xlane.xlu0 %424
    %426 = vadd.xlane.f32.xlu0 %v409
    %v427 = vpop.xlane.xlu0 %426
    %428 = vadd.xlane.f32.xlu0 %v410
    %v429 = vpop.xlane.xlu0 %428
    %430 = vadd.xlane.f32.xlu0 %v411
    %v431 = vpop.xlane.xlu0 %430
    %432 = vadd.xlane.f32.xlu0 %v412
    %v433 = vpop.xlane.xlu0 %432
    %434 = vadd.xlane.f32.xlu0 %v413
    %v435 = vpop.xlane.xlu0 %434
    %436 = vadd.xlane.f32.xlu0 %v414
    %v437 = vpop.xlane.xlu0 %436
    %438 = vadd.xlane.f32.xlu0 %v415
    %v439 = vpop.xlane.xlu0 %438
    %440 = vadd.xlane.f32.xlu0 %v416
    %v441 = vpop.xlane.xlu0 %440
    %442 = vadd.xlane.f32.xlu0 %v417
    %v443 = vpop.xlane.xlu0 %442
    %444 = vadd.xlane.f32.xlu0 %v418
    %v445 = vpop.xlane.xlu0 %444
    %446 = vadd.xlane.f32.xlu0 %v419
    %v447 = vpop.xlane.xlu0 %446
    %448 = vadd.xlane.f32.xlu0 %v420
    %v449 = vpop.xlane.xlu0 %448
    %450 = vadd.xlane.f32.xlu0 %v421
    %v451 = vpop.xlane.xlu0 %450
    %452 = vadd.xlane.f32.xlu0 %v422
    %v453 = vpop.xlane.xlu0 %452
    %454 = vadd.xlane.f32.xlu0 %v423
    %v455 = vpop.xlane.xlu0 %454
    %v456 = vmax.f32 %v425, 1e-24
    %v457 = vmax.f32 %v427, 1e-24
    %v458 = vmax.f32 %v429, 1e-24
    %v459 = vmax.f32 %v431, 1e-24
    %v460 = vmax.f32 %v433, 1e-24
    %v461 = vmax.f32 %v435, 1e-24
    %v462 = vmax.f32 %v437, 1e-24
    %v463 = vmax.f32 %v439, 1e-24
    %v464 = vmax.f32 %v441, 1e-24
    %v465 = vmax.f32 %v443, 1e-24
    %v466 = vmax.f32 %v445, 1e-24
    %v467 = vmax.f32 %v447, 1e-24
    %v468 = vmax.f32 %v449, 1e-24
    %v469 = vmax.f32 %v451, 1e-24
    %v470 = vmax.f32 %v453, 1e-24
    %v471 = vmax.f32 %v455, 1e-24
    %v472 = vrsqrt.pop %v456
    %v473 = vrsqrt.pop %v457
    %v474 = vrsqrt.pop %v458
    %v475 = vrsqrt.pop %v459
    %v476 = vrsqrt.pop %v460
    %v477 = vrsqrt.pop %v461
    %v478 = vrsqrt.pop %v462
    %v479 = vrsqrt.pop %v463
    %v480 = vrsqrt.pop %v464
    %v481 = vrsqrt.pop %v465
    %v482 = vrsqrt.pop %v466
    %v483 = vrsqrt.pop %v467
    %v484 = vrsqrt.pop %v468
    %v485 = vrsqrt.pop %v469
    %v486 = vrsqrt.pop %v470
    %v487 = vrsqrt.pop %v471
    %s488 = sld [smem:[#allocation3]]
    %v489 = vstv %s488
    %v490 = vmul.f32 %v489, %v472
    %v491 = vmul.f32 %v489, %v473
    %v492 = vmul.f32 %v489, %v474
    %v493 = vmul.f32 %v489, %v475
    %v494 = vmul.f32 %v489, %v476
    %v495 = vmul.f32 %v489, %v477
    %v496 = vmul.f32 %v489, %v478
    %v497 = vmul.f32 %v489, %v479
    %v498 = vmul.f32 %v489, %v480
    %v499 = vmul.f32 %v489, %v481
    %v500 = vmul.f32 %v489, %v482
    %v501 = vmul.f32 %v489, %v483
    %v502 = vmul.f32 %v489, %v484
    %v503 = vmul.f32 %v489, %v485
    %v504 = vmul.f32 %v489, %v486
    %v505 = vmul.f32 %v489, %v487
    %v506 = vmul.f32 %v490, %v392
    %v507 = vmul.f32 %v491, %v393
    %v508 = vmul.f32 %v492, %v394
    %v509 = vmul.f32 %v493, %v395
    %v510 = vmul.f32 %v494, %v396
    %v511 = vmul.f32 %v495, %v397
    %v512 = vmul.f32 %v496, %v398
    %v513 = vmul.f32 %v497, %v399
    %v514 = vmul.f32 %v498, %v400
    %v515 = vmul.f32 %v499, %v401
    %v516 = vmul.f32 %v500, %v402
    %v517 = vmul.f32 %v501, %v403
    %v518 = vmul.f32 %v502, %v404
    %v519 = vmul.f32 %v503, %v405
    %v520 = vmul.f32 %v504, %v406
    %v521 = vmul.f32 %v505, %v407
    %522 = vst [vmem:[#allocation2] sm:$0xff] %v506
    %523 = vst [vmem:[#allocation2 + $0x8] sm:$0xff] %v507
    %524 = vst [vmem:[#allocation2 + $0x10] sm:$0xff] %v508
    %525 = vst [vmem:[#allocation2 + $0x18] sm:$0xff] %v509
    %526 = vst [vmem:[#allocation2 + $0x20] sm:$0xff] %v510
    %527 = vst [vmem:[#allocation2 + $0x28] sm:$0xff] %v511
    %528 = vst [vmem:[#allocation2 + $0x30] sm:$0xff] %v512
    %529 = vst [vmem:[#allocation2 + $0x38] sm:$0xff] %v513
    %530 = vst [vmem:[#allocation2 + $0x40] sm:$0xff] %v514
    %531 = vst [vmem:[#allocation2 + $0x48] sm:$0xff] %v515
    %532 = vst [vmem:[#allocation2 + $0x50] sm:$0xff] %v516
    %533 = vst [vmem:[#allocation2 + $0x58] sm:$0xff] %v517
    %534 = vst [vmem:[#allocation2 + $0x60] sm:$0xff] %v518
    %535 = vst [vmem:[#allocation2 + $0x68] sm:$0xff] %v519
    %536 = vst [vmem:[#allocation2 + $0x70] sm:$0xff] %v520
    %537 = vst [vmem:[#allocation2 + $0x78] sm:$0xff] %v521
  $region33: #{cir_forward.1} parent=0 // pred_fallthru
    _
  %v538 = vld [vmem:[%s3] sm:$0xff]
  %v539 = vld [vmem:[%s3 + $0x8] sm:$0xff]
  %v540 = vld [vmem:[%s3 + $0x10] sm:$0xff]
  %v541 = vld [vmem:[%s3 + $0x18] sm:$0xff]
  %v542 = vld [vmem:[%s3 + $0x20] sm:$0xff]
  %v543 = vld [vmem:[%s3 + $0x28] sm:$0xff]
  %v544 = vld [vmem:[%s3 + $0x30] sm:$0xff]
  %v545 = vld [vmem:[%s3 + $0x38] sm:$0xff]
  %v546 = vld [vmem:[%s3 + $0x40] sm:$0xff]
  %v547 = vld [vmem:[%s3 + $0x48] sm:$0xff]
  %v548 = vld [vmem:[%s3 + $0x50] sm:$0xff]
  %v549 = vld [vmem:[%s3 + $0x58] sm:$0xff]
  %v550 = vld [vmem:[%s3 + $0x60] sm:$0xff]
  %v551 = vld [vmem:[%s3 + $0x68] sm:$0xff]
  %v552 = vld [vmem:[%s3 + $0x70] sm:$0xff]
  %v553 = vld [vmem:[%s3 + $0x78] sm:$0xff]
  %v554 = vmul.f32 %v538, %v538
  %v555 = vmul.f32 %v539, %v539
  %v556 = vmul.f32 %v540, %v540
  %v557 = vmul.f32 %v541, %v541
  %v558 = vmul.f32 %v542, %v542
  %v559 = vmul.f32 %v543, %v543
  %v560 = vmul.f32 %v544, %v544
  %v561 = vmul.f32 %v545, %v545
  %v562 = vmul.f32 %v546, %v546
  %v563 = vmul.f32 %v547, %v547
  %v564 = vmul.f32 %v548, %v548
  %v565 = vmul.f32 %v549, %v549
  %v566 = vmul.f32 %v550, %v550
  %v567 = vmul.f32 %v551, %v551
  %v568 = vmul.f32 %v552, %v552
  %v569 = vmul.f32 %v553, %v553
  %570 = vadd.xlane.f32.xlu0 %v554
  %v571 = vpop.xlane.xlu0 %570
  %572 = vadd.xlane.f32.xlu0 %v555
  %v573 = vpop.xlane.xlu0 %572
  %574 = vadd.xlane.f32.xlu0 %v556
  %v575 = vpop.xlane.xlu0 %574
  %576 = vadd.xlane.f32.xlu0 %v557
  %v577 = vpop.xlane.xlu0 %576
  %578 = vadd.xlane.f32.xlu0 %v558
  %v579 = vpop.xlane.xlu0 %578
  %580 = vadd.xlane.f32.xlu0 %v559
  %v581 = vpop.xlane.xlu0 %580
  %582 = vadd.xlane.f32.xlu0 %v560
  %v583 = vpop.xlane.xlu0 %582
  %584 = vadd.xlane.f32.xlu0 %v561
  %v585 = vpop.xlane.xlu0 %584
  %586 = vadd.xlane.f32.xlu0 %v562
  %v587 = vpop.xlane.xlu0 %586
  %588 = vadd.xlane.f32.xlu0 %v563
  %v589 = vpop.xlane.xlu0 %588
  %590 = vadd.xlane.f32.xlu0 %v564
  %v591 = vpop.xlane.xlu0 %590
  %592 = vadd.xlane.f32.xlu0 %v565
  %v593 = vpop.xlane.xlu0 %592
  %594 = vadd.xlane.f32.xlu0 %v566
  %v595 = vpop.xlane.xlu0 %594
  %596 = vadd.xlane.f32.xlu0 %v567
  %v597 = vpop.xlane.xlu0 %596
  %598 = vadd.xlane.f32.xlu0 %v568
  %v599 = vpop.xlane.xlu0 %598
  %600 = vadd.xlane.f32.xlu0 %v569
  %v601 = vpop.xlane.xlu0 %600
  %v602 = vmax.f32 %v571, 1e-24
  %v603 = vmax.f32 %v573, 1e-24
  %v604 = vmax.f32 %v575, 1e-24
  %v605 = vmax.f32 %v577, 1e-24
  %v606 = vmax.f32 %v579, 1e-24
  %v607 = vmax.f32 %v581, 1e-24
  %v608 = vmax.f32 %v583, 1e-24
  %v609 = vmax.f32 %v585, 1e-24
  %v610 = vmax.f32 %v587, 1e-24
  %v611 = vmax.f32 %v589, 1e-24
  %v612 = vmax.f32 %v591, 1e-24
  %v613 = vmax.f32 %v593, 1e-24
  %v614 = vmax.f32 %v595, 1e-24
  %v615 = vmax.f32 %v597, 1e-24
  %v616 = vmax.f32 %v599, 1e-24
  %v617 = vmax.f32 %v601, 1e-24
  %v618 = vrsqrt.pop %v602
  %v619 = vrsqrt.pop %v603
  %v620 = vrsqrt.pop %v604
  %v621 = vrsqrt.pop %v605
  %v622 = vrsqrt.pop %v606
  %v623 = vrsqrt.pop %v607
  %v624 = vrsqrt.pop %v608
  %v625 = vrsqrt.pop %v609
  %v626 = vrsqrt.pop %v610
  %v627 = vrsqrt.pop %v611
  %v628 = vrsqrt.pop %v612
  %v629 = vrsqrt.pop %v613
  %v630 = vrsqrt.pop %v614
  %v631 = vrsqrt.pop %v615
  %v632 = vrsqrt.pop %v616
  %v633 = vrsqrt.pop %v617
  %v634 = vmul.f32 %v538, %v618
  %v635 = vmul.f32 %v539, %v619
  %v636 = vmul.f32 %v540, %v620
  %v637 = vmul.f32 %v541, %v621
  %v638 = vmul.f32 %v542, %v622
  %v639 = vmul.f32 %v543, %v623
  %v640 = vmul.f32 %v544, %v624
  %v641 = vmul.f32 %v545, %v625
  %v642 = vmul.f32 %v546, %v626
  %v643 = vmul.f32 %v547, %v627
  %v644 = vmul.f32 %v548, %v628
  %v645 = vmul.f32 %v549, %v629
  %v646 = vmul.f32 %v550, %v630
  %v647 = vmul.f32 %v551, %v631
  %v648 = vmul.f32 %v552, %v632
  %v649 = vmul.f32 %v553, %v633
  %v650 = vld [vmem:[#allocation2] sm:$0xff]
  %v651 = vld [vmem:[#allocation2 + $0x8] sm:$0xff]
  %v652 = vld [vmem:[#allocation2 + $0x10] sm:$0xff]
  %v653 = vld [vmem:[#allocation2 + $0x18] sm:$0xff]
  %v654 = vld [vmem:[#allocation2 + $0x20] sm:$0xff]
  %v655 = vld [vmem:[#allocation2 + $0x28] sm:$0xff]
  %v656 = vld [vmem:[#allocation2 + $0x30] sm:$0xff]
  %v657 = vld [vmem:[#allocation2 + $0x38] sm:$0xff]
  %v658 = vld [vmem:[#allocation2 + $0x40] sm:$0xff]
  %v659 = vld [vmem:[#allocation2 + $0x48] sm:$0xff]
  %v660 = vld [vmem:[#allocation2 + $0x50] sm:$0xff]
  %v661 = vld [vmem:[#allocation2 + $0x58] sm:$0xff]
  %v662 = vld [vmem:[#allocation2 + $0x60] sm:$0xff]
  %v663 = vld [vmem:[#allocation2 + $0x68] sm:$0xff]
  %v664 = vld [vmem:[#allocation2 + $0x70] sm:$0xff]
  %v665 = vld [vmem:[#allocation2 + $0x78] sm:$0xff]
  %666 = vmatprep.subr.mxu0 0.0
  %667 = vmatpush1.xpose.msra.mxu0 %v649
  %668 = vmatprep.subr.mxu0 0.0
  %669 = vmatpush1.xpose.msra.mxu0 %v648
  %670 = vmatprep.subr.mxu0 0.0
  %671 = vmatpush1.xpose.msra.mxu0 %v647
  %672 = vmatprep.subr.mxu0 0.0
  %673 = vmatpush1.xpose.msra.mxu0 %v646
  %674 = vmatprep.subr.mxu0 0.0
  %675 = vmatpush1.xpose.msra.mxu0 %v645
  %676 = vmatprep.subr.mxu0 0.0
  %677 = vmatpush1.xpose.msra.mxu0 %v644
  %678 = vmatprep.subr.mxu0 0.0
  %679 = vmatpush1.xpose.msra.mxu0 %v643
  %680 = vmatprep.subr.mxu0 0.0
  %681 = vmatpush1.xpose.msra.mxu0 %v642
  %682 = vmatprep.subr.mxu0 0.0
  %683 = vmatpush1.xpose.msra.mxu0 %v641
  %684 = vmatprep.subr.mxu0 0.0
  %685 = vmatpush1.xpose.msra.mxu0 %v640
  %686 = vmatprep.subr.mxu0 0.0
  %687 = vmatpush1.xpose.msra.mxu0 %v639
  %688 = vmatprep.subr.mxu0 0.0
  %689 = vmatpush1.xpose.msra.mxu0 %v638
  %690 = vmatprep.subr.mxu0 0.0
  %691 = vmatpush1.xpose.msra.mxu0 %v637
  %692 = vmatprep.subr.mxu0 0.0
  %693 = vmatpush1.xpose.msra.mxu0 %v636
  %694 = vmatprep.subr.mxu0 0.0
  %695 = vmatpush1.xpose.msra.mxu0 %v635
  %696 = vmatprep.subr.mxu0 0.0
  %697 = vmatpush1.xpose.msra.mxu0 %v634
  %698 = vmatprep.subr.mxu0 0.0
  %699 = vmatpush2.xpose.msra.mxu0 0.0
  %700 = vmatprep.subr.mxu0 0.0
  %701 = vmatpush2.xpose.msra.mxu0 0.0
  %702 = vmatprep.subr.mxu0 0.0
  %703 = vmatpush2.xpose.msra.mxu0 0.0
  %704 = vmatprep.subr.mxu0 0.0
  %705 = vmatpush2.xpose.msra.mxu0 0.0
  %706 = vmatprep.subr.mxu0 0.0
  %707 = vmatpush2.xpose.msra.mxu0 0.0
  %708 = vmatprep.subr.mxu0 0.0
  %709 = vmatpush2.xpose.msra.mxu0 0.0
  %710 = vmatprep.subr.mxu0 0.0
  %711 = vmatpush2.xpose.msra.mxu0 0.0
  %712 = vmatprep.subr.mxu0 0.0
  %713 = vmatpush2.xpose.msra.mxu0 0.0
  %714 = vmatprep.subr.mxu0 0.0
  %715 = vmatpush2.xpose.msra.mxu0 0.0
  %716 = vmatprep.subr.mxu0 0.0
  %717 = vmatpush2.xpose.msra.mxu0 0.0
  %718 = vmatprep.subr.mxu0 0.0
  %719 = vmatpush2.xpose.msra.mxu0 0.0
  %720 = vmatprep.subr.mxu0 0.0
  %721 = vmatpush2.xpose.msra.mxu0 0.0
  %722 = vmatprep.subr.mxu0 0.0
  %723 = vmatpush2.xpose.msra.mxu0 0.0
  %724 = vmatprep.subr.mxu0 0.0
  %725 = vmatpush2.xpose.msra.mxu0 0.0
  %726 = vmatprep.subr.mxu0 0.0
  %727 = vmatpush2.xpose.msra.mxu0 0.0
  %728 = vmatprep.subr.mxu0 0.0
  %729 = vmatpush2.xpose.msra.mxu0 0.0
  %730 = vmatprep.mubr.f32.mxu0 0.0
  %731 = vmatmul.mubr.f32.gmra.mxu0 %v650
  %v732 = vpop.f32.mrf.mxu0
  %v733 = vadd.f32 0.0, %v732
  %v734 = vpop.f32.mrf.mxu0
  %735 = vmatprep.mubr.f32.mxu0 0.0
  %736 = vmatmul.mubr.f32.gmra.mxu0 %v651
  %v737 = vpop.f32.mrf.mxu0
  %v738 = vadd.f32 0.0, %v737
  %v739 = vpop.f32.mrf.mxu0
  %740 = vmatprep.mubr.f32.mxu0 0.0
  %741 = vmatmul.mubr.f32.gmra.mxu0 %v652
  %v742 = vpop.f32.mrf.mxu0
  %v743 = vadd.f32 0.0, %v742
  %v744 = vpop.f32.mrf.mxu0
  %745 = vmatprep.mubr.f32.mxu0 0.0
  %746 = vmatmul.mubr.f32.gmra.mxu0 %v653
  %v747 = vpop.f32.mrf.mxu0
  %v748 = vadd.f32 0.0, %v747
  %v749 = vpop.f32.mrf.mxu0
  %750 = vmatprep.mubr.f32.mxu0 0.0
  %751 = vmatmul.mubr.f32.gmra.mxu0 %v654
  %v752 = vpop.f32.mrf.mxu0
  %v753 = vadd.f32 0.0, %v752
  %v754 = vpop.f32.mrf.mxu0
  %755 = vmatprep.mubr.f32.mxu0 0.0
  %756 = vmatmul.mubr.f32.gmra.mxu0 %v655
  %v757 = vpop.f32.mrf.mxu0
  %v758 = vadd.f32 0.0, %v757
  %v759 = vpop.f32.mrf.mxu0
  %760 = vmatprep.mubr.f32.mxu0 0.0
  %761 = vmatmul.mubr.f32.gmra.mxu0 %v656
  %v762 = vpop.f32.mrf.mxu0
  %v763 = vadd.f32 0.0, %v762
  %v764 = vpop.f32.mrf.mxu0
  %765 = vmatprep.mubr.f32.mxu0 0.0
  %766 = vmatmul.mubr.f32.gmra.mxu0 %v657
  %v767 = vpop.f32.mrf.mxu0
  %v768 = vadd.f32 0.0, %v767
  %v769 = vpop.f32.mrf.mxu0
  %770 = vmatprep.mubr.f32.mxu0 0.0
  %771 = vmatmul.mubr.f32.gmra.mxu0 %v658
  %v772 = vpop.f32.mrf.mxu0
  %v773 = vadd.f32 0.0, %v772
  %v774 = vpop.f32.mrf.mxu0
  %775 = vmatprep.mubr.f32.mxu0 0.0
  %776 = vmatmul.mubr.f32.gmra.mxu0 %v659
  %v777 = vpop.f32.mrf.mxu0
  %v778 = vadd.f32 0.0, %v777
  %v779 = vpop.f32.mrf.mxu0
  %780 = vmatprep.mubr.f32.mxu0 0.0
  %781 = vmatmul.mubr.f32.gmra.mxu0 %v660
  %v782 = vpop.f32.mrf.mxu0
  %v783 = vadd.f32 0.0, %v782
  %v784 = vpop.f32.mrf.mxu0
  %785 = vmatprep.mubr.f32.mxu0 0.0
  %786 = vmatmul.mubr.f32.gmra.mxu0 %v661
  %v787 = vpop.f32.mrf.mxu0
  %v788 = vadd.f32 0.0, %v787
  %v789 = vpop.f32.mrf.mxu0
  %790 = vmatprep.mubr.f32.mxu0 0.0
  %791 = vmatmul.mubr.f32.gmra.mxu0 %v662
  %v792 = vpop.f32.mrf.mxu0
  %v793 = vadd.f32 0.0, %v792
  %v794 = vpop.f32.mrf.mxu0
  %795 = vmatprep.mubr.f32.mxu0 0.0
  %796 = vmatmul.mubr.f32.gmra.mxu0 %v663
  %v797 = vpop.f32.mrf.mxu0
  %v798 = vadd.f32 0.0, %v797
  %v799 = vpop.f32.mrf.mxu0
  %800 = vmatprep.mubr.f32.mxu0 0.0
  %801 = vmatmul.mubr.f32.gmra.mxu0 %v664
  %v802 = vpop.f32.mrf.mxu0
  %v803 = vadd.f32 0.0, %v802
  %v804 = vpop.f32.mrf.mxu0
  %805 = vmatprep.mubr.f32.mxu0 0.0
  %806 = vmatmul.mubr.f32.gmra.mxu0 %v665
  %v807 = vpop.f32.mrf.mxu0
  %v808 = vadd.f32 0.0, %v807
  %v809 = vpop.f32.mrf.mxu0
  %810 = vdwg.mxu0
  %811 = vst [vmem:[%s7] sm:$0xff] %v733
  %812 = vst [vmem:[%s7 + $0x8] sm:$0xff] %v738
  %813 = vst [vmem:[%s7 + $0x10] sm:$0xff] %v743
  %814 = vst [vmem:[%s7 + $0x18] sm:$0xff] %v748
  %815 = vst [vmem:[%s7 + $0x20] sm:$0xff] %v753
  %816 = vst [vmem:[%s7 + $0x28] sm:$0xff] %v758
  %817 = vst [vmem:[%s7 + $0x30] sm:$0xff] %v763
  %818 = vst [vmem:[%s7 + $0x38] sm:$0xff] %v768
  %819 = vst [vmem:[%s7 + $0x40] sm:$0xff] %v773
  %820 = vst [vmem:[%s7 + $0x48] sm:$0xff] %v778
  %821 = vst [vmem:[%s7 + $0x50] sm:$0xff] %v783
  %822 = vst [vmem:[%s7 + $0x58] sm:$0xff] %v788
  %823 = vst [vmem:[%s7 + $0x60] sm:$0xff] %v793
  %824 = vst [vmem:[%s7 + $0x68] sm:$0xff] %v798
  %825 = vst [vmem:[%s7 + $0x70] sm:$0xff] %v803
  %826 = vst [vmem:[%s7 + $0x78] sm:$0xff] %v808
  // Predicated region
  $region34: #{cir_forward.1} parent=0 // pred_check
    _
  $region35: #{cir_forward.1} parent=0 // pred_check_branch
    %828 = sbr.rel (0) target = $region37
  $region36: #{cir_forward.1} parent=0 // pred_region
    _
  $region37: #{cir_forward.1} parent=0 // pred_fallthru
    _
  // Predicated region
  $region38: #{cir_forward.1} parent=0 // pred_check
    _
  $region39: #{cir_forward.1} parent=0 // pred_check_branch
    %830 = sbr.rel (0) target = $region41
  $region40: #{cir_forward.1} parent=0 // pred_region
    _
  $region41: #{cir_forward.1} parent=0 // pred_fallthru
    _

</llo_original>
